<compile_context>
chip_gen: v7x
topology: tpu7x:2x2x1
jax: 0.10.0
libtpu: 0.0.40
codegen_flags: <defaults>
</compile_context>

<pallas_src>
import functools
import math

import jax
import jax.numpy as jnp
from jax.experimental import pallas as pl
from jax.experimental.pallas import tpu as pltpu


def _round_up(x, m):
    return ((x + m - 1) // m) * m


def _pick_vmem_limit():
    # Generation-aware scoped-VMEM limit: ~3/4 of physical VMEM
    # (v5e/v6e 128 MiB -> 96 MiB, v7x 64 MiB -> 48 MiB); conservative fallback.
    try:
        cap = int(pltpu.get_tpu_info().vmem_capacity_bytes)
        return min(96 * 1024 * 1024, (cap * 3) // 4)
    except Exception:
        return 48 * 1024 * 1024


_VMEM_LIMIT_BYTES = _pick_vmem_limit()


# ----------------------------------------------------------------------------
# In-kernel helpers
# ----------------------------------------------------------------------------
def _layernorm(x, g, b, eps=1e-6):
    # Reference explicitly uses nn.LayerNorm(..., eps=1e-06) everywhere.
    mu = jnp.mean(x, axis=-1, keepdims=True)
    var = jnp.mean((x - mu) ** 2, axis=-1, keepdims=True)
    return (x - mu) * jax.lax.rsqrt(var + eps) * g + b


def _softmax_last(x):
    m = jnp.max(x, axis=-1, keepdims=True)
    e = jnp.exp(x - m)
    # EUP-side approximate reciprocal: frees VALU cycles in the attention loop.
    return e * pl.reciprocal(jnp.sum(e, axis=-1, keepdims=True), approx=True)


def _gelu_exact(x):
    # nn.GELU() default: exact erf-based GELU.
    # TODO(synk): on v5e (no bf16 VPU) tanh-approx GELU would route to the EUP.
    return 0.5 * x * (1.0 + jax.lax.erf(x * jnp.float32(0.7071067811865476)))


# ----------------------------------------------------------------------------
# Kernel 1: fused patch embedding.
# Conv2d(kernel=stride=ps) over flattened patches == one matmul; the kernel
# also inserts the cls token at row 0, adds the (zero-padded) positional
# embedding and writes the already-padded (B, Tp, D) token stream.
# ----------------------------------------------------------------------------
def _embed_kernel(patches_ref, w_ref, b_ref, cls_ref, pos_ref, o_ref):
    bb, Tp, Kf = patches_ref.shape
    D = w_ref.shape[1]
    # Merge (bb, Tp) rows -> bigger M for the MXU (Tp is always a multiple of 8
    # so this reshape is layout-trivial).
    p2 = patches_ref[...].reshape(bb * Tp, Kf)
    emb = (
        jnp.dot(p2, w_ref[...], preferred_element_type=jnp.float32)
        + b_ref[...]
    )
    emb = emb.reshape(bb, Tp, D)
    # Row 0 of each sequence is the cls token (patch row there is zero-padded,
    # so we simply overwrite bias+pos-free value with the cls parameter).
    tok_ids = jax.lax.broadcasted_iota(jnp.int32, (bb, Tp, D), 1)
    emb = jnp.where(tok_ids == 0, cls_ref[...], emb)
    o_ref[...] = emb + pos_ref[...]          # pos is zero past the real tokens


def patch_embed_forward(patches, w, b, cls_tok, pos):
    B, Tp, Kf = patches.shape
    D = w.shape[1]
    bb = math.gcd(B, 8)                      # divides B -> no partial blocks
    return pl.pallas_call(
        _embed_kernel,
        out_shape=jax.ShapeDtypeStruct((B, Tp, D), jnp.float32),
        grid=(B // bb,),
        in_specs=[
            pl.BlockSpec((bb, Tp, Kf), lambda i: (i, 0, 0)),
            pl.BlockSpec((Kf, D), lambda i: (0, 0)),
            pl.BlockSpec((1, D), lambda i: (0, 0)),
            pl.BlockSpec((1, D), lambda i: (0, 0)),
            pl.BlockSpec((Tp, D), lambda i: (0, 0)),
        ],
        out_specs=pl.BlockSpec((bb, Tp, D), lambda i: (i, 0, 0)),
        compiler_params=pltpu.CompilerParams(
            dimension_semantics=("parallel",)),
    )(patches, w, b, cls_tok, pos)


# ----------------------------------------------------------------------------
# Kernel 2: ALL transformer blocks fused into one pallas_call.
#   grid = (B, depth)  --  batch parallel, depth "arbitrary" (sequential)
#   residual stream lives in the VMEM-resident output block across the depth
#   axis; per-layer weights (stacked over depth) change block index each layer
#   step, so the next layer's weights are prefetched behind current compute.
#   Per layer:
#       x = x + proj(attn(LN1(x)))
#       x = x + fc2(gelu(fc1(LN2(x))))
# Padded key positions >= n_valid are masked out of the softmax, so padded
# rows never influence real rows (LN/MLP are per-token).
# ----------------------------------------------------------------------------
def _fused_block_kernel(
    x_ref,
    ln1g_ref, ln1b_ref,
    qkvw_ref, qkvb_ref,
    projw_ref, projb_ref,
    ln2g_ref, ln2b_ref,
    fc1w_ref, fc1b_ref,
    fc2w_ref, fc2b_ref,
    o_ref,
    *, n_heads, scale, n_valid,
):
    l = pl.program_id(1)

    # Load the residual stream into the resident output block at layer 0.
    @pl.when(l == 0)
    def _():
        o_ref[...] = x_ref[...]

    x = o_ref[0]                             # (Tp, D) f32 residual stream
    Tp, D = x.shape
    hd = D // n_heads

    # Load small params once (no re-broadcast inside loops).
    ln1g = ln1g_ref[0]
    ln1b = ln1b_ref[0]
    ln2g = ln2g_ref[0]
    ln2b = ln2b_ref[0]
    qkvb = qkvb_ref[0]
    projb = projb_ref[0]
    fc1b = fc1b_ref[0]
    fc2b = fc2b_ref[0]

    # ---- attention branch ----
    xn = _layernorm(x, ln1g, ln1b)
    qkv = (
        jnp.dot(xn.astype(jnp.bfloat16), qkvw_ref[0],
                preferred_element_type=jnp.float32)
        + qkvb
    )                                        # (Tp, 3D) ordered [q | k | v]
    q = qkv[:, 0:D] * scale                  # fold scale into q (not (T,T))
    k = qkv[:, D:2 * D]
    v = qkv[:, 2 * D:3 * D]

    q16 = q.astype(jnp.bfloat16)
    k16 = k.astype(jnp.bfloat16)
    v16 = v.astype(jnp.bfloat16)

    if n_valid < Tp:
        key_ids = jax.lax.broadcasted_iota(jnp.int32, (Tp, Tp), 1)
        key_mask = key_ids < n_valid
    else:
        key_mask = None

    head_outs = []
    for h in range(n_heads):
        lo = h * hd
        hi = lo + hd
        # scores = q_h @ k_h^T (contraction over the head dim)
        s = jax.lax.dot_general(
            q16[:, lo:hi], k16[:, lo:hi], (((1,), (1,)), ((), ())),
            preferred_element_type=jnp.float32,
        )                                                       # (Tp, Tp) f32
        if key_mask is not None:
            s = jnp.where(key_mask, s, jnp.float32(-1e9))
        p = _softmax_last(s)
        head_outs.append(
            jnp.dot(p.astype(jnp.bfloat16), v16[:, lo:hi],
                    preferred_element_type=jnp.float32))

    # Merge heads in registers (lane-dense), then ONE (T,D)@(D,D) projection.
    merged = head_outs[0] if n_heads == 1 else jnp.concatenate(head_outs, -1)
    attn_out = (
        jnp.dot(merged.astype(jnp.bfloat16), projw_ref[0],
                preferred_element_type=jnp.float32)
        + projb
    )

    x = x + attn_out

    # ---- MLP branch (hidden dim zero-padded to a multiple of 128) ----
    xn2 = _layernorm(x, ln2g, ln2b)
    h1 = (
        jnp.dot(xn2.astype(jnp.bfloat16), fc1w_ref[0],
                preferred_element_type=jnp.float32)
        + fc1b
    )
    h1 = _gelu_exact(h1)
    h2 = (
        jnp.dot(h1.astype(jnp.bfloat16), fc2w_ref[0],
                preferred_element_type=jnp.float32)
        + fc2b
    )

    o_ref[0] = x + h2


def fused_blocks_forward(x, blk, *, n_heads, scale, n_valid):
    B, Tp, D = x.shape
    names = ["ln1_g", "ln1_b", "qkv_w", "qkv_b", "proj_w", "proj_b",
             "ln2_g", "ln2_b", "fc1_w", "fc1_b", "fc2_w", "fc2_b"]
    args = [blk[n] for n in names]
    depth = args[0].shape[0]

    in_specs = [pl.BlockSpec((1, Tp, D), lambda b, l: (b, 0, 0))]
    for a in args:
        # Weight block index follows the layer axis -> next-layer weights are
        # double-buffer-prefetched behind current-layer compute.
        in_specs.append(
            pl.BlockSpec((1,) + tuple(a.shape[1:]), lambda b, l: (l, 0, 0)))

    kernel = functools.partial(
        _fused_block_kernel, n_heads=n_heads, scale=scale, n_valid=n_valid)
    return pl.pallas_call(
        kernel,
        out_shape=jax.ShapeDtypeStruct((B, Tp, D), jnp.float32),
        grid=(B, depth),
        in_specs=in_specs,
        out_specs=pl.BlockSpec((1, Tp, D), lambda b, l: (b, 0, 0)),
        input_output_aliases={0: 0},         # donate the residual buffer
        compiler_params=pltpu.CompilerParams(
            dimension_semantics=("parallel", "arbitrary"),
            vmem_limit_bytes=_VMEM_LIMIT_BYTES),
    )(x, *args)


# ----------------------------------------------------------------------------
# Kernel 3: final LayerNorm (applied to the [class] token) + classification
# head.  LayerNorm is per-token, so normalizing only the cls token is exactly
# equivalent to normalizing the full sequence and then selecting token 0.
# ----------------------------------------------------------------------------
def _head_kernel(cls_ref, g_ref, b_ref, w_ref, hb_ref, o_ref):
    xn = _layernorm(cls_ref[...], g_ref[...], b_ref[...])
    o_ref[...] = (
        jnp.dot(xn.astype(jnp.bfloat16), w_ref[...],
                preferred_element_type=jnp.float32)
        + hb_ref[...]
    )


def head_forward(cls_tok, norm_g, norm_b, head_w, head_b):
    B, D = cls_tok.shape
    N = head_w.shape[1]
    return pl.pallas_call(
        _head_kernel,
        out_shape=jax.ShapeDtypeStruct((B, N), jnp.float32),
        grid=(1,),
        in_specs=[
            pl.BlockSpec((B, D), lambda i: (0, 0)),
            pl.BlockSpec((1, D), lambda i: (0, 0)),
            pl.BlockSpec((1, D), lambda i: (0, 0)),
            pl.BlockSpec((D, N), lambda i: (0, 0)),
            pl.BlockSpec((1, N), lambda i: (0, 0)),
        ],
        out_specs=pl.BlockSpec((B, N), lambda i: (0, 0)),
    )(cls_tok, norm_g, norm_b, head_w, head_b)


# ----------------------------------------------------------------------------
# Model: parameter init + forward (glue in plain JAX, hot path in Pallas).
# Matmul weights are stored in bf16 (MXU-friendly, half the DMA bytes);
# biases / LN params / cls / pos-embed stay f32.  Per-block parameters are
# stacked over depth so the whole stack of blocks is one pallas_call.
# ----------------------------------------------------------------------------
class VisionTransformerPallas:
    def __init__(self, img_size, patch_size, in_chan, n_classes, dims, depth,
                 n_heads, mlp_ratio, key):
        assert img_size % patch_size == 0
        assert dims % n_heads == 0
        self.img_size = img_size
        self.patch_size = patch_size
        self.in_chan = in_chan
        self.dims = dims
        self.depth = depth
        self.n_heads = n_heads
        self.head_dims = dims // n_heads
        self.scale = self.head_dims ** (-0.5)
        self.n_patches = (img_size // patch_size) ** 2
        # faithful to the reference: hidden = int(dims ** mlp_ratio)
        self.hidden = int(dims ** mlp_ratio)
        # lane-dense MLP: zero-pad hidden to a multiple of 128 (exact)
        self.hidden_pad = _round_up(self.hidden, 128)

        T = self.n_patches + 1
        self.n_tokens = T
        self.t_pad = _round_up(T, 128) if T > 64 else _round_up(T, 8)

        keys = iter(jax.random.split(key, 12))

        def nrm(shape, s=0.02):
            return s * jax.random.normal(next(keys), shape, jnp.float32)

        d = dims
        Hh = self.hidden
        Hp = self.hidden_pad
        Tp = self.t_pad

        patch_w = nrm((d, in_chan, patch_size, patch_size))  # conv (out,in,kh,kw)
        pos = nrm((T, d))
        pos_pad = jnp.pad(pos, ((0, Tp - T), (0, 0)))        # zeros past T

        fc1 = jnp.pad(nrm((depth, d, Hh)), ((0, 0), (0, 0), (0, Hp - Hh)))
        fc2 = jnp.pad(nrm((depth, Hh, d)), ((0, 0), (0, Hp - Hh), (0, 0)))

        self.params = {
            # pre-flattened conv weight -> (C*ps*ps, d), bf16 for the MXU
            "patch_w_mat": patch_w.reshape(
                d, in_chan * patch_size * patch_size).T.astype(jnp.bfloat16),
            "patch_b": nrm((1, d)),
            "cls_token": nrm((1, d)),
            "pos_embed": pos_pad,                            # (Tp, d) f32
            "norm_g": jnp.ones((1, d), jnp.float32),
            "norm_b": jnp.zeros((1, d), jnp.float32),
            "head_w": nrm((d, n_classes)).astype(jnp.bfloat16),
            "head_b": jnp.zeros((1, n_classes), jnp.float32),
            # all per-block params stacked over depth
            "blocks": {
                "ln1_g": jnp.ones((depth, 1, d), jnp.float32),
                "ln1_b": jnp.zeros((depth, 1, d), jnp.float32),
                # VisionTransformer passes p (=0.0) into Block's qkv_bias slot,
                # so the qkv projection effectively has no bias -> zeros.
                "qkv_w": nrm((depth, d, 3 * d)).astype(jnp.bfloat16),
                "qkv_b": jnp.zeros((depth, 1, 3 * d), jnp.float32),
                "proj_w": nrm((depth, d, d)).astype(jnp.bfloat16),
                "proj_b": jnp.zeros((depth, 1, d), jnp.float32),
                "ln2_g": jnp.ones((depth, 1, d), jnp.float32),
                "ln2_b": jnp.zeros((depth, 1, d), jnp.float32),
                "fc1_w": fc1.astype(jnp.bfloat16),
                "fc1_b": jnp.zeros((depth, 1, Hp), jnp.float32),
                "fc2_w": fc2.astype(jnp.bfloat16),
                "fc2_b": jnp.zeros((depth, 1, d), jnp.float32),
            },
        }

    def __call__(self, x):
        # x: (B, C, H, W)  -- NCHW, like the PyTorch Conv2d input
        B, C, H, W = x.shape
        ps = self.patch_size
        gh, gw = H // ps, W // ps
        T = self.n_tokens
        Tp = self.t_pad

        # Patch extraction (layout shuffle only).  One zero row is prepended
        # (cls-token slot) and the token axis is zero-padded to Tp so the
        # embed kernel writes the final padded token stream directly.
        patches = (
            x.reshape(B, C, gh, ps, gw, ps)
            .transpose(0, 2, 4, 1, 3, 5)                 # (B, gh, gw, C, ps, ps)
            .reshape(B, gh * gw, C * ps * ps)
        )
        patches = jnp.pad(
            patches, ((0, 0), (1, Tp - T), (0, 0))).astype(jnp.bfloat16)

        # PatchEmbed + cls token + pos embed + padding, fused in one kernel.
        xs = patch_embed_forward(
            patches,
            self.params["patch_w_mat"], self.params["patch_b"],
            self.params["cls_token"], self.params["pos_embed"],
        )                                                # (B, Tp, d) f32
        # pos_drop is identity (p=0).

        # All transformer blocks in a single pallas_call (depth grid axis).
        xs = fused_blocks_forward(
            xs, self.params["blocks"],
            n_heads=self.n_heads, scale=self.scale, n_valid=T)

        cls_final = xs[:, 0, :]                          # (B, d)
        logits = head_forward(
            cls_final,
            self.params["norm_g"], self.params["norm_b"],
            self.params["head_w"], self.params["head_b"],
        )
        return logits


if __name__ == "__main__":
    key = jax.random.PRNGKey(0)
    kx, kp = jax.random.split(key)

    # small, forward-consistent shapes
    B, C, IMG, PS = 2, 4, 16, 8          # -> n_patches = 4, tokens = 5 (pad to 8)
    DIMS, DEPTH, NH = 32, 2, 4           # head_dims = 8
    NCLS, MLP_RATIO = 10, 1.25           # hidden = int(32 ** 1.25) = 76 -> pad 128

    x = jax.random.normal(kx, (B, C, IMG, IMG), jnp.float32)

    model = VisionTransformerPallas(
        img_size=IMG, patch_size=PS, in_chan=C, n_classes=NCLS,
        dims=DIMS, depth=DEPTH, n_heads=NH, mlp_ratio=MLP_RATIO, key=kp,
    )

    logits = model(x)
    jax.block_until_ready(logits)
    assert logits.shape == (B, NCLS), logits.shape
    assert bool(jnp.all(jnp.isfinite(logits)))
    print("KERNEL_OK")
</pallas_src>

<mosaic_0001>
module attributes {stable_mosaic.version = 11 : i64} {
  func.func @_embed_kernel(%arg0: i32, %arg1: memref<2x8x256xbf16, #tpu.memory_space<vmem>>, %arg2: memref<256x32xbf16, #tpu.memory_space<vmem>>, %arg3: memref<1x32xf32, #tpu.memory_space<vmem>>, %arg4: memref<1x32xf32, #tpu.memory_space<vmem>>, %arg5: memref<8x32xf32, #tpu.memory_space<vmem>>, %arg6: memref<2x8x32xf32, #tpu.memory_space<vmem>>) attributes {dimension_semantics = [#tpu.dimension_semantics<parallel>], iteration_bounds = array<i64: 1>, scalar_prefetch = 0 : i64, scratch_operands = 0 : i64, tpu.core_type = #tpu.core_type<tc>, window_params = [{transform_indices = @transform_0, window_bounds = array<i64: 2, 8, 256>}, {pipeline_mode = #tpu.pipeline_mode<synchronous>, transform_indices = @transform_1, window_bounds = array<i64: 256, 32>}, {pipeline_mode = #tpu.pipeline_mode<synchronous>, transform_indices = @transform_2, window_bounds = array<i64: 1, 32>}, {pipeline_mode = #tpu.pipeline_mode<synchronous>, transform_indices = @transform_3, window_bounds = array<i64: 1, 32>}, {pipeline_mode = #tpu.pipeline_mode<synchronous>, transform_indices = @transform_4, window_bounds = array<i64: 8, 32>}, {transform_indices = @transform_5, window_bounds = array<i64: 2, 8, 32>}]} {
    %c0 = arith.constant 0 : index
    %c0_0 = arith.constant 0 : index
    %c0_1 = arith.constant 0 : index
    %0 = vector.load %arg1[%c0, %c0_0, %c0_1] : memref<2x8x256xbf16, #tpu.memory_space<vmem>>, vector<2x8x256xbf16>
    %1 = vector.shape_cast %0 : vector<2x8x256xbf16> to vector<16x256xbf16>
    %c0_2 = arith.constant 0 : index
    %c0_3 = arith.constant 0 : index
    %2 = vector.load %arg2[%c0_2, %c0_3] : memref<256x32xbf16, #tpu.memory_space<vmem>>, vector<256x32xbf16>
    %cst = arith.constant dense<0.000000e+00> : vector<16x32xf32>
    %3 = tpu.matmul %1, %2, %cst {dimension_numbers = #tpu.dot_dimension_numbers<[1], [0], [0], [1], [0, 0, 1, 1], [], []>} : vector<16x256xbf16>, vector<256x32xbf16>, vector<16x32xf32> -> vector<16x32xf32>
    %c0_4 = arith.constant 0 : index
    %c0_5 = arith.constant 0 : index
    %4 = vector.load %arg3[%c0_4, %c0_5] : memref<1x32xf32, #tpu.memory_space<vmem>>, vector<1x32xf32>
    %5 = vector.broadcast %4 : vector<1x32xf32> to vector<16x32xf32>
    %6 = arith.addf %3, %5 : vector<16x32xf32>
    %7 = vector.shape_cast %6 : vector<16x32xf32> to vector<2x8x32xf32>
    %8 = tpu.iota {dimensions = array<i32: 1>} : vector<2x8x32xi32>
    %c0_i32 = arith.constant 0 : i32
    %9 = vector.broadcast %c0_i32 : i32 to vector<2x8x32xi32>
    %10 = arith.cmpi eq, %8, %9 : vector<2x8x32xi32>
    %c0_6 = arith.constant 0 : index
    %c0_7 = arith.constant 0 : index
    %11 = vector.load %arg4[%c0_6, %c0_7] : memref<1x32xf32, #tpu.memory_space<vmem>>, vector<1x32xf32>
    %12 = vector.shape_cast %11 : vector<1x32xf32> to vector<1x1x32xf32>
    %13 = vector.broadcast %12 : vector<1x1x32xf32> to vector<2x8x32xf32>
    %14 = arith.select %10, %13, %7 : vector<2x8x32xi1>, vector<2x8x32xf32>
    %c0_8 = arith.constant 0 : index
    %c0_9 = arith.constant 0 : index
    %15 = vector.load %arg5[%c0_8, %c0_9] : memref<8x32xf32, #tpu.memory_space<vmem>>, vector<8x32xf32>
    %16 = vector.shape_cast %15 : vector<8x32xf32> to vector<1x8x32xf32>
    %17 = vector.broadcast %16 : vector<1x8x32xf32> to vector<2x8x32xf32>
    %18 = arith.addf %14, %17 : vector<2x8x32xf32>
    %c0_10 = arith.constant 0 : index
    %c0_11 = arith.constant 0 : index
    %c0_12 = arith.constant 0 : index
    %19 = vector.load %arg6[%c0_10, %c0_11, %c0_12] : memref<2x8x32xf32, #tpu.memory_space<vmem>>, vector<2x8x32xf32>
    tpu.vector_store %arg6[%c0_10, %c0_11, %c0_12], %18 {strides = array<i32>} : memref<2x8x32xf32, #tpu.memory_space<vmem>>, vector<2x8x32xf32>,
    return
  }
  func.func @transform_0(%arg0: i32) -> (i32, i32, i32) {
    %c0_i32 = arith.constant 0 : i32
    %c0_i32_0 = arith.constant 0 : i32
    %c0_i32_1 = arith.constant 0 : i32
    return %arg0, %c0_i32, %c0_i32_0 : i32, i32, i32
  }
  func.func @transform_1(%arg0: i32) -> (i32, i32) {
    %c0_i32 = arith.constant 0 : i32
    %c0_i32_0 = arith.constant 0 : i32
    %c0_i32_1 = arith.constant 0 : i32
    return %c0_i32, %c0_i32_0 : i32, i32
  }
  func.func @transform_2(%arg0: i32) -> (i32, i32) {
    %c0_i32 = arith.constant 0 : i32
    %c0_i32_0 = arith.constant 0 : i32
    %c0_i32_1 = arith.constant 0 : i32
    return %c0_i32, %c0_i32_0 : i32, i32
  }
  func.func @transform_3(%arg0: i32) -> (i32, i32) {
    %c0_i32 = arith.constant 0 : i32
    %c0_i32_0 = arith.constant 0 : i32
    %c0_i32_1 = arith.constant 0 : i32
    return %c0_i32, %c0_i32_0 : i32, i32
  }
  func.func @transform_4(%arg0: i32) -> (i32, i32) {
    %c0_i32 = arith.constant 0 : i32
    %c0_i32_0 = arith.constant 0 : i32
    %c0_i32_1 = arith.constant 0 : i32
    return %c0_i32, %c0_i32_0 : i32, i32
  }
  func.func @transform_5(%arg0: i32) -> (i32, i32, i32) {
    %c0_i32 = arith.constant 0 : i32
    %c0_i32_0 = arith.constant 0 : i32
    %c0_i32_1 = arith.constant 0 : i32
    return %arg0, %c0_i32, %c0_i32_0 : i32, i32, i32
  }
}

</mosaic_0001>

<llo_original>
// kernel: tpu_custom_call.1
$region0: #{tpu_custom_call.1}
  #allocation0 [shape = 'u32[]', space=smem, size = 0x4, offset = 0x4, fixed_abs, tag = 'smem constant byte address 0x4 - core index']
  #allocation1 [shape = 'u32[144,128]{1,0:T(1,128)}', space=vmem, size = 0x12000, scoped, tag = 'internal scratch']
  %s0 = inlined_call_operand.vmem [shape: bf16[2,8,256], index: 0, kind: input, shape index: {}]
  %s1 = inlined_call_operand.vmem [shape: bf16[256,32], index: 1, kind: input, shape index: {}]
  %s2 = inlined_call_operand.vmem [shape: f32[1,32], index: 2, kind: input, shape index: {}]
  %s3 = inlined_call_operand.vmem [shape: f32[1,32], index: 3, kind: input, shape index: {}]
  %s4 = inlined_call_operand.vmem [shape: f32[8,32], index: 4, kind: input, shape index: {}]
  %s5 = inlined_call_operand.hbm [shape: f32[2,8,32], index: 5, kind: output, shape index: {}]
  %s6 = sld [smem:[#allocation0]]
  $region30: #{tpu_custom_call.1} parent=0
    _
  %s8 = ssub.s32 1, %s6
  %s9 = scalar_select 0, %s8, %s6
  $region1: #{tpu_custom_call.1} parent=0
    #allocation2 [shape = 'u8[8192]{0}', space=vmem, size = 0x2000, scoped, tag = 'output window, operand 0, single buffered']
    #allocation3 [shape = 's32[1]{0}', space=sflag, size = 0x4, scoped, tag = 'scoped memory for tpu_custom_call.1']
    %10 = vsyncpa [#allocation3], 0
    // Predicated region
    $region2: #{tpu_custom_call.1} parent=1 // pred_check
      _
    $region3: #{tpu_custom_call.1} parent=1 // pred_check_branch
      %12 = sbr.rel (0) target = $region5
    $region4: #{tpu_custom_call.1} parent=1 // pred_region
      _
    $region5: #{tpu_custom_call.1} parent=1 // pred_fallthru
      _
    // Predicated region
    $region6: #{tpu_custom_call.1} parent=1 // pred_check
      _
    $region7: #{tpu_custom_call.1} parent=1 // pred_check_branch
      %14 = sbr.rel (0) target = $region9
    $region8: #{tpu_custom_call.1} parent=1 // pred_region
      _
    $region9: #{tpu_custom_call.1} parent=1 // pred_fallthru
      _
    // Predicated region
    $region10: #{tpu_custom_call.1} parent=1 // pred_check
      _
    $region11: #{tpu_custom_call.1} parent=1 // pred_check_branch
      %16 = sbr.rel (0) target = $region13
    $region12: #{tpu_custom_call.1} parent=1 // pred_region
      _
    $region13: #{tpu_custom_call.1} parent=1 // pred_fallthru
      _
    // Predicated region
    $region14: #{tpu_custom_call.1} parent=1 // pred_check
      _
    $region15: #{tpu_custom_call.1} parent=1 // pred_check_branch
      %18 = sbr.rel (0) target = $region17
    $region16: #{tpu_custom_call.1} parent=1 // pred_region
      _
    $region17: #{tpu_custom_call.1} parent=1 // pred_fallthru
      _
    // Predicated region
    $region18: #{tpu_custom_call.1} parent=1 // pred_check
      _
    $region19: #{tpu_custom_call.1} parent=1 // pred_check_branch
      %20 = sbr.rel (0) target = $region21
    $region20: #{tpu_custom_call.1} parent=1 // pred_region
      _
    $region21: #{tpu_custom_call.1} parent=1 // pred_fallthru
      _
    %v22 = vld [vmem:[%s0] sm:$0xff]
    %v23 = vld [vmem:[%s0 + $0x8] sm:$0xff]
    %v24 = vld [vmem:[%s1] sm:$0xf]
    %v25 = vld [vmem:[%s1 + $0x4] sm:$0xf]
    %v26 = vld [vmem:[%s1 + $0x8] sm:$0xf]
    %v27 = vld [vmem:[%s1 + $0xc] sm:$0xf]
    %v28 = vld [vmem:[%s1 + $0x10] sm:$0xf]
    %v29 = vld [vmem:[%s1 + $0x14] sm:$0xf]
    %v30 = vld [vmem:[%s1 + $0x18] sm:$0xf]
    %v31 = vld [vmem:[%s1 + $0x1c] sm:$0xf]
    %v32 = vld [vmem:[%s1 + $0x20] sm:$0xf]
    %v33 = vld [vmem:[%s1 + $0x24] sm:$0xf]
    %v34 = vld [vmem:[%s1 + $0x28] sm:$0xf]
    %v35 = vld [vmem:[%s1 + $0x2c] sm:$0xf]
    %v36 = vld [vmem:[%s1 + $0x30] sm:$0xf]
    %v37 = vld [vmem:[%s1 + $0x34] sm:$0xf]
    %v38 = vld [vmem:[%s1 + $0x38] sm:$0xf]
    %v39 = vld [vmem:[%s1 + $0x3c] sm:$0xf]
    %v40 = vld [vmem:[%s1 + $0x40] sm:$0xf]
    %v41 = vld [vmem:[%s1 + $0x44] sm:$0xf]
    %v42 = vld [vmem:[%s1 + $0x48] sm:$0xf]
    %v43 = vld [vmem:[%s1 + $0x4c] sm:$0xf]
    %v44 = vld [vmem:[%s1 + $0x50] sm:$0xf]
    %v45 = vld [vmem:[%s1 + $0x54] sm:$0xf]
    %v46 = vld [vmem:[%s1 + $0x58] sm:$0xf]
    %v47 = vld [vmem:[%s1 + $0x5c] sm:$0xf]
    %v48 = vld [vmem:[%s1 + $0x60] sm:$0xf]
    %v49 = vld [vmem:[%s1 + $0x64] sm:$0xf]
    %v50 = vld [vmem:[%s1 + $0x68] sm:$0xf]
    %v51 = vld [vmem:[%s1 + $0x6c] sm:$0xf]
    %v52 = vld [vmem:[%s1 + $0x70] sm:$0xf]
    %v53 = vld [vmem:[%s1 + $0x74] sm:$0xf]
    %v54 = vld [vmem:[%s1 + $0x78] sm:$0xf]
    %v55 = vld [vmem:[%s1 + $0x7c] sm:$0xf]
    %v56 = vld [vmem:[%s2] sm:$0x1]
    %v58 = vlaneseq
    %v59 = vshrl.u32 %v58, 7
    %v60 = vsub.s32 0, %v59
    %v61 = vrot.slane %v56, %v60
    %v65 = vunpack.c.l.b16 %v22
    %v66 = vunpack.c.h.b16 %v22
    %v67 = vunpack.c.l.b16 %v23
    %v68 = vunpack.c.h.b16 %v23
    %v69 = vpack.c.b16 %v67, %v65
    %v70 = vpack.c.b16 %v68, %v66
    %v105 = vunpack.c.l.b16 %v24
    %v106 = vunpack.c.l.b16 %v25
    %v107 = vunpack.c.l.b16 %v26
    %v108 = vunpack.c.l.b16 %v27
    %v109 = vunpack.c.l.b16 %v28
    %v110 = vunpack.c.l.b16 %v29
    %v111 = vunpack.c.l.b16 %v30
    %v112 = vunpack.c.l.b16 %v31
    %v113 = vunpack.c.l.b16 %v32
    %v114 = vunpack.c.l.b16 %v33
    %v115 = vunpack.c.l.b16 %v34
    %v116 = vunpack.c.l.b16 %v35
    %v117 = vunpack.c.l.b16 %v36
    %v118 = vunpack.c.l.b16 %v37
    %v119 = vunpack.c.l.b16 %v38
    %v120 = vunpack.c.l.b16 %v39
    %v121 = vunpack.c.l.b16 %v40
    %v122 = vunpack.c.l.b16 %v41
    %v123 = vunpack.c.l.b16 %v42
    %v124 = vunpack.c.l.b16 %v43
    %v125 = vunpack.c.l.b16 %v44
    %v126 = vunpack.c.l.b16 %v45
    %v127 = vunpack.c.l.b16 %v46
    %v128 = vunpack.c.l.b16 %v47
    %v129 = vunpack.c.l.b16 %v48
    %v130 = vunpack.c.l.b16 %v49
    %v131 = vunpack.c.l.b16 %v50
    %v132 = vunpack.c.l.b16 %v51
    %v133 = vunpack.c.l.b16 %v52
    %v134 = vunpack.c.l.b16 %v53
    %v135 = vunpack.c.l.b16 %v54
    %v136 = vunpack.c.l.b16 %v55
    %v137 = vpack.c.b16 %v106, %v105
    %v138 = vpack.c.b16 %v108, %v107
    %v139 = vpack.c.b16 %v110, %v109
    %v140 = vpack.c.b16 %v112, %v111
    %v141 = vpack.c.b16 %v114, %v113
    %v142 = vpack.c.b16 %v116, %v115
    %v143 = vpack.c.b16 %v118, %v117
    %v144 = vpack.c.b16 %v120, %v119
    %v145 = vpack.c.b16 %v122, %v121
    %v146 = vpack.c.b16 %v124, %v123
    %v147 = vpack.c.b16 %v126, %v125
    %v148 = vpack.c.b16 %v128, %v127
    %v149 = vpack.c.b16 %v130, %v129
    %v150 = vpack.c.b16 %v132, %v131
    %v151 = vpack.c.b16 %v134, %v133
    %v152 = vpack.c.b16 %v136, %v135
    %169 = vmatprep.subr.bf16.mxu0 0
    %170 = vmatpush1.bf16.msra.mxu0 %v137
    %171 = vmatprep.subr.bf16.mxu0 0
    %172 = vmatpush1.bf16.msra.mxu0 %v138
    %173 = vmatprep.subr.bf16.mxu0 0
    %174 = vmatpush1.bf16.msra.mxu0 %v139
    %175 = vmatprep.subr.bf16.mxu0 0
    %176 = vmatpush1.bf16.msra.mxu0 %v140
    %177 = vmatprep.subr.bf16.mxu0 0
    %178 = vmatpush1.bf16.msra.mxu0 %v141
    %179 = vmatprep.subr.bf16.mxu0 0
    %180 = vmatpush1.bf16.msra.mxu0 %v142
    %181 = vmatprep.subr.bf16.mxu0 0
    %182 = vmatpush1.bf16.msra.mxu0 %v143
    %183 = vmatprep.subr.bf16.mxu0 0
    %184 = vmatpush1.bf16.msra.mxu0 %v144
    %185 = vmatprep.subr.bf16.mxu0 0
    %186 = vmatpush1.bf16.msra.mxu0 %v145
    %187 = vmatprep.subr.bf16.mxu0 0
    %188 = vmatpush1.bf16.msra.mxu0 %v146
    %189 = vmatprep.subr.bf16.mxu0 0
    %190 = vmatpush1.bf16.msra.mxu0 %v147
    %191 = vmatprep.subr.bf16.mxu0 0
    %192 = vmatpush1.bf16.msra.mxu0 %v148
    %193 = vmatprep.subr.bf16.mxu0 0
    %194 = vmatpush1.bf16.msra.mxu0 %v149
    %195 = vmatprep.subr.bf16.mxu0 0
    %196 = vmatpush1.bf16.msra.mxu0 %v150
    %197 = vmatprep.subr.bf16.mxu0 0
    %198 = vmatpush1.bf16.msra.mxu0 %v151
    %199 = vmatprep.subr.bf16.mxu0 0
    %200 = vmatpush1.bf16.msra.mxu0 %v152
    %201 = vmatprep.mubr.bf16.mxu0 %v70
    %202 = vmatmul.mubr.bf16.gmra.mrb[0].mxu0 %v69
    %v203 = vpop.f32.mrb[0].mxu0
    %v204 = vadd.f32 %v61, %v203
    %v205 = vpop.f32.mrb[0].mxu0
    %v206 = vpop.f32.mrb[0].mxu0
    %v207 = vadd.f32 %v61, %v206
    %v208 = vpop.f32.mrb[0].mxu0
    %209 = vdwg.mxu0
    %v210 = vlaneseq
    %v211 = vshrl.u32 %v210, 7
    %vm212 = vcmp.eq.s32.totalorder %v211, 0
    %v213 = vld [vmem:[%s3] sm:$0x1]
    %v215 = vlaneseq
    %v216 = vshrl.u32 %v215, 7
    %v217 = vsub.s32 0, %v216
    %v218 = vrot.slane %v213, %v217
    %v220 = vsel %vm212, %v218, %v204
    %v221 = vsel %vm212, %v218, %v207
    %v222 = vld [vmem:[%s4] sm:$0xff]
    %v223 = vadd.f32 %v220, %v222
    %v224 = vadd.f32 %v221, %v222
    %vm225 = vcmask 261120
    %226 = vst.msk [vmem:[#allocation2] sm:$0xff] %vm225, %v223
    %227 = vst.msk [vmem:[#allocation2 + $0x8] sm:$0xff] %vm225, %v224
    // Predicated region
    $region22: #{tpu_custom_call.1} parent=1 // pred_check
      _
    $region23: #{tpu_custom_call.1} parent=1 // pred_check_branch
      %229 = sbr.rel (0) target = $region25
    $region24: #{tpu_custom_call.1} parent=1 // pred_region
      %s231 = ssub.s32 256, 256
      %232 = vsyncadd [#allocation3], %s231
      %s233 = sshll.u32 [#allocation2], 4
      %s234 = int_to_ptr.vmem [resolvable:$true] %s233
      %239 = dma.vmem_to_hbm [thread:$0]  %s234, 256, %s5, [#allocation3], 128, 128, 8
    $region25: #{tpu_custom_call.1} parent=1 // pred_fallthru
      _
    // Predicated region
    $region26: #{tpu_custom_call.1} parent=1 // pred_check
      _
    $region27: #{tpu_custom_call.1} parent=1 // pred_check_branch
      %241 = sbr.rel (0) target = $region29
    $region28: #{tpu_custom_call.1} parent=1 // pred_region
      %242 = dma.done [#allocation3], 256
    $region29: #{tpu_custom_call.1} parent=1 // pred_fallthru
      _
    %243 = vsyncpa [#allocation3], 1

</llo_original>
